<compile_context>
chip_gen: v5e
topology: v5e:2x2
jax: 0.10.0
libtpu: 0.0.40
codegen_flags: <defaults>
</compile_context>

<pallas_src>
import functools

import jax
import jax.numpy as jnp
from jax import lax
from jax.experimental import pallas as pl
from jax.experimental.pallas import tpu as pltpu


def _gap_kernel(x_ref, out_ref, acc_ref, *, L, tile_l, acc_w):
    """Global average pool over the last dim, tiled over (C, L).

    x_ref  : (TILE_C, TILE_L)    input stripe
    out_ref: (TILE_C, 1)         per-row mean (written on last L tile only)
    acc_ref: (TILE_C, acc_w) f32 lane-dense running row-sum accumulator
    """
    j = pl.program_id(1)
    last = pl.num_programs(1) - 1

    @pl.when(j == 0)
    def _init():
        acc_ref[...] = jnp.zeros_like(acc_ref)

    def accumulate(xv):
        if acc_w == 1:
            # Fallback path (tile_l not a multiple of 128 -> tile_l == L, tiny).
            acc_ref[...] += jnp.sum(xv, axis=1, keepdims=True)
        else:
            # Pure VPU adds over static, lane-aligned 128-wide chunks; the
            # XLU cross-lane reduce is deferred to the finalize step.
            s = xv[:, 0:acc_w]
            for k in range(1, tile_l // acc_w):
                s = s + xv[:, k * acc_w:(k + 1) * acc_w]
            acc_ref[...] += s

    x = x_ref[...].astype(jnp.float32)  # (TILE_C, TILE_L)

    if L % tile_l != 0:
        # Only the last L tile can be ragged: mask it there, keep every other
        # step on the unmasked (cheaper) path.
        @pl.when(j < last)
        def _body():
            accumulate(x)

        @pl.when(j == last)
        def _tail():
            col = lax.broadcasted_iota(jnp.int32, x.shape, 1) + j * tile_l
            accumulate(jnp.where(col < L, x, 0.0))
    else:
        accumulate(x)

    @pl.when(j == last)
    def _finalize():
        if acc_w == 1:
            total = acc_ref[...]
        else:
            total = jnp.sum(acc_ref[...], axis=1, keepdims=True)  # (TILE_C, 1)
        # Static 1/L constant: no divide / reciprocal at runtime.
        out_ref[...] = (total * (1.0 / L)).astype(out_ref.dtype)


def _round_down(v, m):
    return max(m, (v // m) * m)


def _round_up(v, m):
    return ((v + m - 1) // m) * m


def gap_self_attention(x, *, num_classes=1, tile_c_cap=1024, tile_l_cap=4096):
    """GAP_self_Attention.forward: x (C, L) -> (C, num_classes).

    Matches x.unsqueeze(0) -> AdaptiveAvgPool1d(num_classes) -> squeeze(0)
    for the module default num_classes=1 (mean over L).
    """
    if num_classes != 1:
        # TODO(synk): num_classes > 1 (true adaptive bins) not implemented.
        raise NotImplementedError("only num_classes=1 (the module default) is supported")
    if x.ndim != 2:
        raise ValueError(f"expected a 2-D (C, L) input, got shape {x.shape}")

    C, L = x.shape
    itemsize = jnp.dtype(x.dtype).itemsize

    # Legal tile granularity: sublane multiple for C (8 for f32, 16 for bf16,
    # 32 for int8), lane multiple of 128 for L.
    sub = 8 if itemsize >= 4 else 8 * (4 // itemsize)
    lane = 128

    # Generation-aware VMEM budget: ~48 MiB on v7x (64 MiB physical per TC),
    # ~96 MiB on v5e/v6e (128 MiB physical).
    try:
        vmem_cap = int(pltpu.get_tpu_info().vmem_capacity_bytes)
    except Exception:
        vmem_cap = 64 * 1024 * 1024  # conservative default, safe everywhere
    vmem_limit = min((vmem_cap * 3) // 4, 100 * 1024 * 1024)
    # Double-buffered input + scratch + output must fit with headroom.
    max_tile_bytes = min(vmem_limit // 4, 16 * 1024 * 1024)

    # Sanitize user caps (compile-time legality, not silent wrong results).
    tile_c_cap = _round_down(int(tile_c_cap), sub)
    tile_l_cap = _round_down(int(tile_l_cap), lane)

    # L tile: full dim if it fits the cap, else the (lane-aligned) cap.
    tile_l = L if L <= tile_l_cap else tile_l_cap

    # C tile: aim for >= 2 blocks so the "parallel" axis actually shards across
    # both v7x TensorCores (no-op when C is too small; harmless on v5e/v6e).
    tile_c_target = min(tile_c_cap, _round_up(pl.cdiv(C, 2), sub))
    tile_c = C if C <= tile_c_target else tile_c_target

    # Byte-cap the stripe so double-buffering fits the per-generation budget.
    while tile_c * tile_l * itemsize > max_tile_bytes and tile_l > lane:
        tile_l = _round_down(tile_l // 2, lane)
    while tile_c * tile_l * itemsize > max_tile_bytes and tile_c > sub:
        tile_c = _round_down(tile_c // 2, sub)

    # Lane-dense accumulator width: 128 when the L tile is lane-aligned,
    # otherwise (tiny, untiled L) fall back to a 1-wide accumulator.
    acc_w = lane if tile_l % lane == 0 else 1

    grid = (pl.cdiv(C, tile_c), pl.cdiv(L, tile_l))

    return pl.pallas_call(
        functools.partial(_gap_kernel, L=L, tile_l=tile_l, acc_w=acc_w),
        out_shape=jax.ShapeDtypeStruct((C, num_classes), x.dtype),
        grid_spec=pltpu.PrefetchScalarGridSpec(
            num_scalar_prefetch=0,
            grid=grid,
            in_specs=[pl.BlockSpec((tile_c, tile_l), lambda i, j: (i, j))],
            # Output block index is constant along the L (reduction) axis:
            # it stays VMEM-resident and is written back once at the end.
            out_specs=pl.BlockSpec((tile_c, 1), lambda i, j: (i, 0)),
            scratch_shapes=[pltpu.VMEM((tile_c, acc_w), jnp.float32)],
        ),
        compiler_params=pltpu.CompilerParams(
            dimension_semantics=("parallel", "arbitrary"),
            vmem_limit_bytes=vmem_limit,
        ),
    )(x)


if __name__ == "__main__":
    key = jax.random.PRNGKey(0)
    k1, k2, k3, k4 = jax.random.split(key, 4)

    # 1) Nominal module shape (D=512 channels, L=1024), default tiling.
    #    tile_c = 256 -> 2 C blocks (v7x megacore sharding).
    C, L = 512, 1024
    x = jax.random.normal(k1, (C, L), jnp.float32)
    out = jax.block_until_ready(gap_self_attention(x))
    ref = jnp.mean(x, axis=1, keepdims=True)
    assert out.shape == (C, 1), out.shape
    assert jnp.allclose(out, ref, atol=1e-5, rtol=1e-5), float(jnp.max(jnp.abs(out - ref)))

    # 2) Multi-tile accumulation path (small caps force a (2, 4) grid).
    x2 = jax.random.normal(k2, (128, 1024), jnp.float32)
    out2 = jax.block_until_ready(gap_self_attention(x2, tile_c_cap=64, tile_l_cap=256))
    ref2 = jnp.mean(x2, axis=1, keepdims=True)
    assert out2.shape == (128, 1), out2.shape
    assert jnp.allclose(out2, ref2, atol=1e-5, rtol=1e-5), float(jnp.max(jnp.abs(out2 - ref2)))

    # 3) Ragged reduction tail (200 % 128 != 0): masked last L tile,
    #    lane-dense accumulator path.
    x3 = jax.random.normal(k3, (32, 200), jnp.float32)
    out3 = jax.block_until_ready(gap_self_attention(x3, tile_l_cap=128))
    ref3 = jnp.mean(x3, axis=1, keepdims=True)
    assert out3.shape == (32, 1), out3.shape
    assert jnp.allclose(out3, ref3, atol=1e-5, rtol=1e-5), float(jnp.max(jnp.abs(out3 - ref3)))

    # 4) L not a multiple of 128 and untiled: acc_w == 1 fallback path.
    x4 = jax.random.normal(k4, (16, 100), jnp.float32)
    out4 = jax.block_until_ready(gap_self_attention(x4))
    ref4 = jnp.mean(x4, axis=1, keepdims=True)
    assert out4.shape == (16, 1), out4.shape
    assert jnp.allclose(out4, ref4, atol=1e-5, rtol=1e-5), float(jnp.max(jnp.abs(out4 - ref4)))

    print("KERNEL_OK")
</pallas_src>

<mosaic_0001>
module attributes {stable_mosaic.version = 11 : i64} {
  func.func @_gap_kernel(%arg0: i32, %arg1: i32, %arg2: memref<256x1024xf32, #tpu.memory_space<vmem>>, %arg3: memref<256x1xf32, #tpu.memory_space<vmem>>, %arg4: memref<256x128xf32, #tpu.memory_space<vmem>>) attributes {dimension_semantics = [#tpu.dimension_semantics<parallel>, #tpu.dimension_semantics<arbitrary>], iteration_bounds = array<i64: 2, 1>, scalar_prefetch = 0 : i64, scratch_operands = 1 : i64, tpu.core_type = #tpu.core_type<tc>, window_params = [{transform_indices = @transform_0, window_bounds = array<i64: 256, 1024>}, {transform_indices = @transform_1, window_bounds = array<i64: 256, 1>}]} {
    %c0_i32 = arith.constant 0 : i32
    %0 = arith.cmpi eq, %arg1, %c0_i32 : i32
    %1 = arith.extui %0 : i1 to i32
    %c0_i32_0 = arith.constant 0 : i32
    %2 = arith.cmpi ne, %1, %c0_i32_0 : i32
    scf.if %2 {
      %cst = arith.constant 0.000000e+00 : f32
      %25 = vector.broadcast %cst : f32 to vector<256x128xf32>
      %c0_8 = arith.constant 0 : index
      %c0_9 = arith.constant 0 : index
      %26 = vector.load %arg4[%c0_8, %c0_9] : memref<256x128xf32, #tpu.memory_space<vmem>>, vector<256x128xf32>
      tpu.vector_store %arg4[%c0_8, %c0_9], %25 {strides = array<i32>} : memref<256x128xf32, #tpu.memory_space<vmem>>, vector<256x128xf32>,
    } else {
    }
    %c0 = arith.constant 0 : index
    %c0_1 = arith.constant 0 : index
    %3 = vector.load %arg2[%c0, %c0_1] : memref<256x1024xf32, #tpu.memory_space<vmem>>, vector<256x1024xf32>
    %4 = vector.extract_strided_slice %3 {offsets = [0, 0], sizes = [256, 128], strides = [1, 1]} : vector<256x1024xf32> to vector<256x128xf32>
    %5 = vector.extract_strided_slice %3 {offsets = [0, 128], sizes = [256, 128], strides = [1, 1]} : vector<256x1024xf32> to vector<256x128xf32>
    %6 = arith.addf %4, %5 : vector<256x128xf32>
    %7 = vector.extract_strided_slice %3 {offsets = [0, 256], sizes = [256, 128], strides = [1, 1]} : vector<256x1024xf32> to vector<256x128xf32>
    %8 = arith.addf %6, %7 : vector<256x128xf32>
    %9 = vector.extract_strided_slice %3 {offsets = [0, 384], sizes = [256, 128], strides = [1, 1]} : vector<256x1024xf32> to vector<256x128xf32>
    %10 = arith.addf %8, %9 : vector<256x128xf32>
    %11 = vector.extract_strided_slice %3 {offsets = [0, 512], sizes = [256, 128], strides = [1, 1]} : vector<256x1024xf32> to vector<256x128xf32>
    %12 = arith.addf %10, %11 : vector<256x128xf32>
    %13 = vector.extract_strided_slice %3 {offsets = [0, 640], sizes = [256, 128], strides = [1, 1]} : vector<256x1024xf32> to vector<256x128xf32>
    %14 = arith.addf %12, %13 : vector<256x128xf32>
    %15 = vector.extract_strided_slice %3 {offsets = [0, 768], sizes = [256, 128], strides = [1, 1]} : vector<256x1024xf32> to vector<256x128xf32>
    %16 = arith.addf %14, %15 : vector<256x128xf32>
    %17 = vector.extract_strided_slice %3 {offsets = [0, 896], sizes = [256, 128], strides = [1, 1]} : vector<256x1024xf32> to vector<256x128xf32>
    %18 = arith.addf %16, %17 : vector<256x128xf32>
    %c0_2 = arith.constant 0 : index
    %c0_3 = arith.constant 0 : index
    %19 = vector.load %arg4[%c0_2, %c0_3] : memref<256x128xf32, #tpu.memory_space<vmem>>, vector<256x128xf32>
    %20 = arith.addf %19, %18 : vector<256x128xf32>
    %c0_4 = arith.constant 0 : index
    %c0_5 = arith.constant 0 : index
    %21 = vector.load %arg4[%c0_4, %c0_5] : memref<256x128xf32, #tpu.memory_space<vmem>>, vector<256x128xf32>
    tpu.vector_store %arg4[%c0_4, %c0_5], %20 {strides = array<i32>} : memref<256x128xf32, #tpu.memory_space<vmem>>, vector<256x128xf32>,
    %c0_i32_6 = arith.constant 0 : i32
    %22 = arith.cmpi eq, %arg1, %c0_i32_6 : i32
    %23 = arith.extui %22 : i1 to i32
    %c0_i32_7 = arith.constant 0 : i32
    %24 = arith.cmpi ne, %23, %c0_i32_7 : i32
    scf.if %24 {
      %c0_8 = arith.constant 0 : index
      %c0_9 = arith.constant 0 : index
      %25 = vector.load %arg4[%c0_8, %c0_9] : memref<256x128xf32, #tpu.memory_space<vmem>>, vector<256x128xf32>
      %cst = arith.constant dense<0.000000e+00> : vector<256xf32>
      %26 = vector.multi_reduction <add>, %25, %cst [1] : vector<256x128xf32> to vector<256xf32>
      %27 = vector.shape_cast %26 : vector<256xf32> to vector<256x1xf32>
      %cst_10 = arith.constant 9.765625E-4 : f32
      %28 = vector.broadcast %cst_10 : f32 to vector<256x1xf32>
      %29 = arith.mulf %27, %28 : vector<256x1xf32>
      %c0_11 = arith.constant 0 : index
      %c0_12 = arith.constant 0 : index
      %30 = vector.load %arg3[%c0_11, %c0_12] : memref<256x1xf32, #tpu.memory_space<vmem>>, vector<256x1xf32>
      tpu.vector_store %arg3[%c0_11, %c0_12], %29 {strides = array<i32>} : memref<256x1xf32, #tpu.memory_space<vmem>>, vector<256x1xf32>,
    } else {
    }
    return
  }
  func.func @transform_0(%arg0: i32, %arg1: i32) -> (i32, i32) {
    %c0_i32 = arith.constant 0 : i32
    return %arg0, %arg1 : i32, i32
  }
  func.func @transform_1(%arg0: i32, %arg1: i32) -> (i32, i32) {
    %c0_i32 = arith.constant 0 : i32
    %c0_i32_0 = arith.constant 0 : i32
    return %arg0, %c0_i32 : i32, i32
  }
}

</mosaic_0001>

<llo_original>
// kernel: tpu_custom_call.1
$region0: #{tpu_custom_call.1}
  #allocation0 [shape = 'u32[]', space=smem, size = 0x4, offset = 0x4, fixed_abs, tag = 'smem constant byte address 0x4 - core index']
  #allocation1 [shape = 'u32[72,128]{1,0:T(1,128)}', space=vmem, size = 0x9000, scoped, tag = 'internal scratch']
  #allocation2 [shape = 'f32[256,128]{1,0:T(8,128)}', space=vmem, size = 0x20000, scoped, tag = 'scratch operand']
  %s0 = inlined_call_operand.hbm [shape: f32[512,1024], index: 0, kind: input, shape index: {}]
  %s1 = inlined_call_operand.vmem [shape: f32[512,1], index: 1, kind: output, shape index: {}]
  %s2 = sld [smem:[#allocation0]]
  $region49: #{tpu_custom_call.1} parent=0
    _
  %s4 = ssub.s32 1, %s2
  %s5 = scalar_select 0, %s4, %s2
  $region1: #{tpu_custom_call.1} parent=0
    #allocation3 [shape = 'u8[2097152]{0}', space=vmem, size = 0x200000, scoped, tag = 'input window, operand 0']
    #allocation4 [shape = 's32[2]{0}', space=sflag, size = 0x8, scoped, tag = 'scoped memory for tpu_custom_call.1']
    %6 = vsyncpa [#allocation4], 0
    %s7 = scalar_lea.sflag [#allocation4], 1
    %8 = vsyncpa %s7, 0
    loop: start=0, step=1, limit=4
    $region2: #{tpu_custom_call.1} parent=1 // loop_pre_header
      _
    $region3: #{tpu_custom_call.1} parent=1 // loop_header
      %s10 = sphi 0, %s14
      %p11 = scmp.ge.s32.totalorder %s10, 4
      %s17 = sphi 0, %s29
      %s18 = sphi 0, %s25
      %s19 = sphi 0, %s17
      %s20 = sphi 0, %s18
      %s21 = sphi 0, %s19
      %s22 = sphi 0, %s20
      %s34 = sphi 0, %s36
      %s37 = sphi 0, %s34
      %s38 = sphi 0, %s37
      %s54 = sphi 0, %s38
      %s60 = sphi 0, %s62
      %s63 = sphi 0, %s60
      %s64 = sphi 0, %s63
      %s80 = sphi 0, %s64
    $region4: #{tpu_custom_call.1} parent=1 // loop_header_branch
      %13 = sbr.rel (%p11) target = $region8
    $region5: #{tpu_custom_call.1} parent=1 // loop_body
      %s15 = ssub.s32 %s10, 1
      %s16 = ssub.s32 %s10, 2
      %s23 = sadd.s32 1, %s18
      %p24 = scmp.ge.s32.totalorder %s23, 1
      %s25 = scalar_select %p24, 0, %s23
      %s26 = sadd.s32 1, %s17
      %s27 = scalar_select %p24, %s26, %s17
      %p28 = scmp.ge.s32.totalorder %s27, 2
      %s29 = scalar_select %p28, 0, %s27
      %s30 = ssub.s32 %s17, %s29
      %s31 = ssub.s32 %s18, %s25
      %s32 = sor.u32 %s30, %s31
      %p33 = scmp.eq.s32.totalorder %s32, 0
      %s35 = sadd.s32 %s34, 1
      %s36 = scalar_select %p33, %s34, %s35
      %p39 = pneg %p33
      %p40 = scmp.eq.s32.totalorder %s10, 1
      %p41 = por %p39, %p40
      %p42 = scmp.ne.s32.totalorder %s34, %s37
      %p43 = scmp.eq.s32.totalorder %s10, 0
      %p44 = por %p42, %p43
      %p45 = scmp.ne.s32.totalorder %s34, %s37
      %p46 = scmp.eq.s32.totalorder %s15, 1
      %p47 = por %p45, %p46
      %p48 = scmp.ne.s32.totalorder %s37, %s38
      %p49 = scmp.eq.s32.totalorder %s15, 0
      %p50 = por %p48, %p49
      %p51 = scmp.ne.s32.totalorder %s37, %s38
      %p52 = scmp.eq.s32.totalorder %s16, 1
      %p53 = por %p51, %p52
      %p55 = scmp.ne.s32.totalorder %s38, %s54
      %p56 = scmp.eq.s32.totalorder %s16, 0
      %p57 = por %p55, %p56
      %s58 = ssub.s32 %s17, %s29
      %p59 = scmp.eq.s32.totalorder %s58, 0
      %s61 = sadd.s32 %s60, 1
      %s62 = scalar_select %p59, %s60, %s61
      %p65 = pneg %p59
      %p66 = scmp.eq.s32.totalorder %s10, 1
      %p67 = por %p65, %p66
      %p68 = scmp.ne.s32.totalorder %s60, %s63
      %p69 = scmp.eq.s32.totalorder %s10, 0
      %p70 = por %p68, %p69
      %p71 = scmp.ne.s32.totalorder %s60, %s63
      %p72 = scmp.eq.s32.totalorder %s15, 1
      %p73 = por %p71, %p72
      %p74 = scmp.ne.s32.totalorder %s63, %s64
      %p75 = scmp.eq.s32.totalorder %s15, 0
      %p76 = por %p74, %p75
      %p77 = scmp.ne.s32.totalorder %s63, %s64
      %p78 = scmp.eq.s32.totalorder %s16, 1
      %p79 = por %p77, %p78
      %p81 = scmp.ne.s32.totalorder %s64, %s80
      %p82 = scmp.eq.s32.totalorder %s16, 0
      %p83 = por %p81, %p82
      %p84 = scmp.le.s32.totalorder 1, %s10
      %p85 = scmp.lt.s32.totalorder %s10, 3
      %p86 = pnand %p84, %p85
      %p87 = pneg %p86
      // Predicated region
      $region9: #{tpu_custom_call.1} parent=5 // pred_check
        _
      $region10: #{tpu_custom_call.1} parent=5 // pred_check_branch
        %89 = sbr.rel (%p86) target = $region12
      $region11: #{tpu_custom_call.1} parent=5 // pred_region
        %s90 = ssub.s32 %s10, 1
      $region12: #{tpu_custom_call.1} parent=5 // pred_fallthru
        _
      %p91 = scmp.lt.s32.totalorder %s10, 2
      // Predicated region
      $region13: #{tpu_custom_call.1} parent=5 // pred_check
        %p92 = pneg %p91
      $region14: #{tpu_custom_call.1} parent=5 // pred_check_branch
        %94 = sbr.rel (%p92) target = $region16
      $region15: #{tpu_custom_call.1} parent=5 // pred_region
        // Predicated region
        $region17: #{tpu_custom_call.1} parent=15 // pred_check
          %p95 = pneg %p44
        $region18: #{tpu_custom_call.1} parent=15 // pred_check_branch
          %97 = sbr.rel (%p95) target = $region20
        $region19: #{tpu_custom_call.1} parent=15 // pred_region
          %s98 = sand.u32 %s34, 1
          %s99 = scalar_lea.sflag [#allocation4], %s98
          %s100 = sand.u32 %s34, 1
          %s101 = smul.addr %s100, 2048
          %s102 = scalar_lea.vmem [#allocation3], %s101
          %s103 = smul.u32 32, %s17
          %s104 = smul.u32 8, %s18
          %106 = vsyncadd %s99, 0
          %s107 = smul.addr %s103, 8
          %s108 = sadd.s32 %s104, %s107
          %s109 = smul.addr %s108, 8
          %s110 = scalar_lea.hbm %s0, %s109
          %s111 = sshll.u32 %s110, 4
          %s112 = int_to_ptr.hbm [resolvable:$true] %s111
          %s113 = sshll.u32 %s102, 4
          %s114 = int_to_ptr.vmem [resolvable:$true] %s113
          %119 = dma.hbm_to_vmem [thread:$0]  %s112, 32768, %s114, %s99, 1024, 1024, 64
        $region20: #{tpu_custom_call.1} parent=15 // pred_fallthru
          _
      $region16: #{tpu_custom_call.1} parent=5 // pred_fallthru
        _
      %p120 = scmp.le.s32.totalorder 1, %s10
      %p121 = scmp.lt.s32.totalorder %s10, 3
      %p122 = pnand %p120, %p121
      %p123 = pneg %p122
      // Predicated region
      $region21: #{tpu_custom_call.1} parent=5 // pred_check
        _
      $region22: #{tpu_custom_call.1} parent=5 // pred_check_branch
        %125 = sbr.rel (%p122) target = $region24
      $region23: #{tpu_custom_call.1} parent=5 // pred_region
        %s126 = ssub.s32 %s10, 1
        %s127 = sand.u32 %s37, 1
        %s128 = scalar_lea.sflag [#allocation4], %s127
        %s129 = sand.u32 %s37, 1
        %s130 = smul.addr %s129, 2048
        %s131 = scalar_lea.vmem [#allocation3], %s130
        // Predicated region
        $region25: #{tpu_custom_call.1} parent=23 // pred_check
          %p132 = pneg %p50
        $region26: #{tpu_custom_call.1} parent=23 // pred_check_branch
          %134 = sbr.rel (%p132) target = $region28
        $region27: #{tpu_custom_call.1} parent=23 // pred_region
          %136 = dma.done %s128, 32768
        $region28: #{tpu_custom_call.1} parent=23 // pred_fallthru
          _
        %s137 = sand.u32 %s37, 1
        %s138 = scalar_lea.sflag [#allocation4], %s137
        %s139 = sand.u32 %s37, 1
        %s140 = smul.addr %s139, 2048
        %s141 = scalar_lea.vmem [#allocation3], %s140
        %p142 = pneg %p50
        %p143 = pneg %p47
        %p144 = pneg %p76
        %p145 = pneg %p73
        %s146 = smul.u32 32, %s19
        %p147 = scmp.lt.s32.totalorder %s146, 63
        %s148 = scalar_select %p147, %s146, 63
        %s149 = smul.addr %s148, 8
        %s150 = scalar_lea.vmem %s1, %s149
        %s151 = smul.u32 32, %s19
        %s152 = smul.u32 8, %s20
        %s153 = smul.u32 32, %s19
        %p154 = scmp.lt.s32.totalorder %s153, 63
        %s155 = scalar_select %p154, %s153, 63
        %s156 = smul.addr %s155, 8
        %s157 = scalar_lea.vmem %s1, %s156
        %s158 = smul.u32 32, %s19
        %p159 = scmp.eq.s32.totalorder %s20, 0
        // Predicated region
        $region29: #{tpu_custom_call.1} parent=23 // pred_check
          %p160 = pneg %p159
        $region30: #{tpu_custom_call.1} parent=23 // pred_check_branch
          %162 = sbr.rel (%p160) target = $region32
        $region31: #{tpu_custom_call.1} parent=23 // pred_region
          %163 = vst [vmem:[#allocation2] sm:$0xff] 0.0
          %164 = vst [vmem:[#allocation2 + $0x8] sm:$0xff] 0.0
          %165 = vst [vmem:[#allocation2 + $0x10] sm:$0xff] 0.0
          %166 = vst [vmem:[#allocation2 + $0x18] sm:$0xff] 0.0
          %167 = vst [vmem:[#allocation2 + $0x20] sm:$0xff] 0.0
          %168 = vst [vmem:[#allocation2 + $0x28] sm:$0xff] 0.0
          %169 = vst [vmem:[#allocation2 + $0x30] sm:$0xff] 0.0
          %170 = vst [vmem:[#allocation2 + $0x38] sm:$0xff] 0.0
          %171 = vst [vmem:[#allocation2 + $0x40] sm:$0xff] 0.0
          %172 = vst [vmem:[#allocation2 + $0x48] sm:$0xff] 0.0
          %173 = vst [vmem:[#allocation2 + $0x50] sm:$0xff] 0.0
          %174 = vst [vmem:[#allocation2 + $0x58] sm:$0xff] 0.0
          %175 = vst [vmem:[#allocation2 + $0x60] sm:$0xff] 0.0
          %176 = vst [vmem:[#allocation2 + $0x68] sm:$0xff] 0.0
          %177 = vst [vmem:[#allocation2 + $0x70] sm:$0xff] 0.0
          %178 = vst [vmem:[#allocation2 + $0x78] sm:$0xff] 0.0
          %179 = vst [vmem:[#allocation2 + $0x80] sm:$0xff] 0.0
          %180 = vst [vmem:[#allocation2 + $0x88] sm:$0xff] 0.0
          %181 = vst [vmem:[#allocation2 + $0x90] sm:$0xff] 0.0
          %182 = vst [vmem:[#allocation2 + $0x98] sm:$0xff] 0.0
          %183 = vst [vmem:[#allocation2 + $0xa0] sm:$0xff] 0.0
          %184 = vst [vmem:[#allocation2 + $0xa8] sm:$0xff] 0.0
          %185 = vst [vmem:[#allocation2 + $0xb0] sm:$0xff] 0.0
          %186 = vst [vmem:[#allocation2 + $0xb8] sm:$0xff] 0.0
          %187 = vst [vmem:[#allocation2 + $0xc0] sm:$0xff] 0.0
          %188 = vst [vmem:[#allocation2 + $0xc8] sm:$0xff] 0.0
          %189 = vst [vmem:[#allocation2 + $0xd0] sm:$0xff] 0.0
          %190 = vst [vmem:[#allocation2 + $0xd8] sm:$0xff] 0.0
          %191 = vst [vmem:[#allocation2 + $0xe0] sm:$0xff] 0.0
          %192 = vst [vmem:[#allocation2 + $0xe8] sm:$0xff] 0.0
          %193 = vst [vmem:[#allocation2 + $0xf0] sm:$0xff] 0.0
          %194 = vst [vmem:[#allocation2 + $0xf8] sm:$0xff] 0.0
        $region32: #{tpu_custom_call.1} parent=23 // pred_fallthru
          _
        %v195 = vld [vmem:[%s131] sm:$0xff]
        %v196 = vld [vmem:[%s131 + $0x8] sm:$0xff]
        %v197 = vld [vmem:[%s131 + $0x10] sm:$0xff]
        %v198 = vld [vmem:[%s131 + $0x18] sm:$0xff]
        %v199 = vld [vmem:[%s131 + $0x20] sm:$0xff]
        %v200 = vld [vmem:[%s131 + $0x28] sm:$0xff]
        %v201 = vld [vmem:[%s131 + $0x30] sm:$0xff]
        %v202 = vld [vmem:[%s131 + $0x38] sm:$0xff]
        %v203 = vld [vmem:[%s131 + $0x40] sm:$0xff]
        %v204 = vld [vmem:[%s131 + $0x48] sm:$0xff]
        %v205 = vld [vmem:[%s131 + $0x50] sm:$0xff]
        %v206 = vld [vmem:[%s131 + $0x58] sm:$0xff]
        %v207 = vld [vmem:[%s131 + $0x60] sm:$0xff]
        %v208 = vld [vmem:[%s131 + $0x68] sm:$0xff]
        %v209 = vld [vmem:[%s131 + $0x70] sm:$0xff]
        %v210 = vld [vmem:[%s131 + $0x78] sm:$0xff]
        %v211 = vld [vmem:[%s131 + $0x80] sm:$0xff]
        %v212 = vld [vmem:[%s131 + $0x88] sm:$0xff]
        %v213 = vld [vmem:[%s131 + $0x90] sm:$0xff]
        %v214 = vld [vmem:[%s131 + $0x98] sm:$0xff]
        %v215 = vld [vmem:[%s131 + $0xa0] sm:$0xff]
        %v216 = vld [vmem:[%s131 + $0xa8] sm:$0xff]
        %v217 = vld [vmem:[%s131 + $0xb0] sm:$0xff]
        %v218 = vld [vmem:[%s131 + $0xb8] sm:$0xff]
        %v219 = vld [vmem:[%s131 + $0xc0] sm:$0xff]
        %v220 = vld [vmem:[%s131 + $0xc8] sm:$0xff]
        %v221 = vld [vmem:[%s131 + $0xd0] sm:$0xff]
        %v222 = vld [vmem:[%s131 + $0xd8] sm:$0xff]
        %v223 = vld [vmem:[%s131 + $0xe0] sm:$0xff]
        %v224 = vld [vmem:[%s131 + $0xe8] sm:$0xff]
        %v225 = vld [vmem:[%s131 + $0xf0] sm:$0xff]
        %v226 = vld [vmem:[%s131 + $0xf8] sm:$0xff]
        %v227 = vld [vmem:[%s131 + $0x100] sm:$0xff]
        %v228 = vld [vmem:[%s131 + $0x108] sm:$0xff]
        %v229 = vld [vmem:[%s131 + $0x110] sm:$0xff]
        %v230 = vld [vmem:[%s131 + $0x118] sm:$0xff]
        %v231 = vld [vmem:[%s131 + $0x120] sm:$0xff]
        %v232 = vld [vmem:[%s131 + $0x128] sm:$0xff]
        %v233 = vld [vmem:[%s131 + $0x130] sm:$0xff]
        %v234 = vld [vmem:[%s131 + $0x138] sm:$0xff]
        %v235 = vld [vmem:[%s131 + $0x140] sm:$0xff]
        %v236 = vld [vmem:[%s131 + $0x148] sm:$0xff]
        %v237 = vld [vmem:[%s131 + $0x150] sm:$0xff]
        %v238 = vld [vmem:[%s131 + $0x158] sm:$0xff]
        %v239 = vld [vmem:[%s131 + $0x160] sm:$0xff]
        %v240 = vld [vmem:[%s131 + $0x168] sm:$0xff]
        %v241 = vld [vmem:[%s131 + $0x170] sm:$0xff]
        %v242 = vld [vmem:[%s131 + $0x178] sm:$0xff]
        %v243 = vld [vmem:[%s131 + $0x180] sm:$0xff]
        %v244 = vld [vmem:[%s131 + $0x188] sm:$0xff]
        %v245 = vld [vmem:[%s131 + $0x190] sm:$0xff]
        %v246 = vld [vmem:[%s131 + $0x198] sm:$0xff]
        %v247 = vld [vmem:[%s131 + $0x1a0] sm:$0xff]
        %v248 = vld [vmem:[%s131 + $0x1a8] sm:$0xff]
        %v249 = vld [vmem:[%s131 + $0x1b0] sm:$0xff]
        %v250 = vld [vmem:[%s131 + $0x1b8] sm:$0xff]
        %v251 = vld [vmem:[%s131 + $0x1c0] sm:$0xff]
        %v252 = vld [vmem:[%s131 + $0x1c8] sm:$0xff]
        %v253 = vld [vmem:[%s131 + $0x1d0] sm:$0xff]
        %v254 = vld [vmem:[%s131 + $0x1d8] sm:$0xff]
        %v255 = vld [vmem:[%s131 + $0x1e0] sm:$0xff]
        %v256 = vld [vmem:[%s131 + $0x1e8] sm:$0xff]
        %v257 = vld [vmem:[%s131 + $0x1f0] sm:$0xff]
        %v258 = vld [vmem:[%s131 + $0x1f8] sm:$0xff]
        %v259 = vld [vmem:[%s131 + $0x200] sm:$0xff]
        %v260 = vld [vmem:[%s131 + $0x208] sm:$0xff]
        %v261 = vld [vmem:[%s131 + $0x210] sm:$0xff]
        %v262 = vld [vmem:[%s131 + $0x218] sm:$0xff]
        %v263 = vld [vmem:[%s131 + $0x220] sm:$0xff]
        %v264 = vld [vmem:[%s131 + $0x228] sm:$0xff]
        %v265 = vld [vmem:[%s131 + $0x230] sm:$0xff]
        %v266 = vld [vmem:[%s131 + $0x238] sm:$0xff]
        %v267 = vld [vmem:[%s131 + $0x240] sm:$0xff]
        %v268 = vld [vmem:[%s131 + $0x248] sm:$0xff]
        %v269 = vld [vmem:[%s131 + $0x250] sm:$0xff]
        %v270 = vld [vmem:[%s131 + $0x258] sm:$0xff]
        %v271 = vld [vmem:[%s131 + $0x260] sm:$0xff]
        %v272 = vld [vmem:[%s131 + $0x268] sm:$0xff]
        %v273 = vld [vmem:[%s131 + $0x270] sm:$0xff]
        %v274 = vld [vmem:[%s131 + $0x278] sm:$0xff]
        %v275 = vld [vmem:[%s131 + $0x280] sm:$0xff]
        %v276 = vld [vmem:[%s131 + $0x288] sm:$0xff]
        %v277 = vld [vmem:[%s131 + $0x290] sm:$0xff]
        %v278 = vld [vmem:[%s131 + $0x298] sm:$0xff]
        %v279 = vld [vmem:[%s131 + $0x2a0] sm:$0xff]
        %v280 = vld [vmem:[%s131 + $0x2a8] sm:$0xff]
        %v281 = vld [vmem:[%s131 + $0x2b0] sm:$0xff]
        %v282 = vld [vmem:[%s131 + $0x2b8] sm:$0xff]
        %v283 = vld [vmem:[%s131 + $0x2c0] sm:$0xff]
        %v284 = vld [vmem:[%s131 + $0x2c8] sm:$0xff]
        %v285 = vld [vmem:[%s131 + $0x2d0] sm:$0xff]
        %v286 = vld [vmem:[%s131 + $0x2d8] sm:$0xff]
        %v287 = vld [vmem:[%s131 + $0x2e0] sm:$0xff]
        %v288 = vld [vmem:[%s131 + $0x2e8] sm:$0xff]
        %v289 = vld [vmem:[%s131 + $0x2f0] sm:$0xff]
        %v290 = vld [vmem:[%s131 + $0x2f8] sm:$0xff]
        %v291 = vld [vmem:[%s131 + $0x300] sm:$0xff]
        %v292 = vld [vmem:[%s131 + $0x308] sm:$0xff]
        %v293 = vld [vmem:[%s131 + $0x310] sm:$0xff]
        %v294 = vld [vmem:[%s131 + $0x318] sm:$0xff]
        %v295 = vld [vmem:[%s131 + $0x320] sm:$0xff]
        %v296 = vld [vmem:[%s131 + $0x328] sm:$0xff]
        %v297 = vld [vmem:[%s131 + $0x330] sm:$0xff]
        %v298 = vld [vmem:[%s131 + $0x338] sm:$0xff]
        %v299 = vld [vmem:[%s131 + $0x340] sm:$0xff]
        %v300 = vld [vmem:[%s131 + $0x348] sm:$0xff]
        %v301 = vld [vmem:[%s131 + $0x350] sm:$0xff]
        %v302 = vld [vmem:[%s131 + $0x358] sm:$0xff]
        %v303 = vld [vmem:[%s131 + $0x360] sm:$0xff]
        %v304 = vld [vmem:[%s131 + $0x368] sm:$0xff]
        %v305 = vld [vmem:[%s131 + $0x370] sm:$0xff]
        %v306 = vld [vmem:[%s131 + $0x378] sm:$0xff]
        %v307 = vld [vmem:[%s131 + $0x380] sm:$0xff]
        %v308 = vld [vmem:[%s131 + $0x388] sm:$0xff]
        %v309 = vld [vmem:[%s131 + $0x390] sm:$0xff]
        %v310 = vld [vmem:[%s131 + $0x398] sm:$0xff]
        %v311 = vld [vmem:[%s131 + $0x3a0] sm:$0xff]
        %v312 = vld [vmem:[%s131 + $0x3a8] sm:$0xff]
        %v313 = vld [vmem:[%s131 + $0x3b0] sm:$0xff]
        %v314 = vld [vmem:[%s131 + $0x3b8] sm:$0xff]
        %v315 = vld [vmem:[%s131 + $0x3c0] sm:$0xff]
        %v316 = vld [vmem:[%s131 + $0x3c8] sm:$0xff]
        %v317 = vld [vmem:[%s131 + $0x3d0] sm:$0xff]
        %v318 = vld [vmem:[%s131 + $0x3d8] sm:$0xff]
        %v319 = vld [vmem:[%s131 + $0x3e0] sm:$0xff]
        %v320 = vld [vmem:[%s131 + $0x3e8] sm:$0xff]
        %v321 = vld [vmem:[%s131 + $0x3f0] sm:$0xff]
        %v322 = vld [vmem:[%s131 + $0x3f8] sm:$0xff]
        %v323 = vld [vmem:[%s131 + $0x400] sm:$0xff]
        %v324 = vld [vmem:[%s131 + $0x408] sm:$0xff]
        %v325 = vld [vmem:[%s131 + $0x410] sm:$0xff]
        %v326 = vld [vmem:[%s131 + $0x418] sm:$0xff]
        %v327 = vld [vmem:[%s131 + $0x420] sm:$0xff]
        %v328 = vld [vmem:[%s131 + $0x428] sm:$0xff]
        %v329 = vld [vmem:[%s131 + $0x430] sm:$0xff]
        %v330 = vld [vmem:[%s131 + $0x438] sm:$0xff]
        %v331 = vld [vmem:[%s131 + $0x440] sm:$0xff]
        %v332 = vld [vmem:[%s131 + $0x448] sm:$0xff]
        %v333 = vld [vmem:[%s131 + $0x450] sm:$0xff]
        %v334 = vld [vmem:[%s131 + $0x458] sm:$0xff]
        %v335 = vld [vmem:[%s131 + $0x460] sm:$0xff]
        %v336 = vld [vmem:[%s131 + $0x468] sm:$0xff]
        %v337 = vld [vmem:[%s131 + $0x470] sm:$0xff]
        %v338 = vld [vmem:[%s131 + $0x478] sm:$0xff]
        %v339 = vld [vmem:[%s131 + $0x480] sm:$0xff]
        %v340 = vld [vmem:[%s131 + $0x488] sm:$0xff]
        %v341 = vld [vmem:[%s131 + $0x490] sm:$0xff]
        %v342 = vld [vmem:[%s131 + $0x498] sm:$0xff]
        %v343 = vld [vmem:[%s131 + $0x4a0] sm:$0xff]
        %v344 = vld [vmem:[%s131 + $0x4a8] sm:$0xff]
        %v345 = vld [vmem:[%s131 + $0x4b0] sm:$0xff]
        %v346 = vld [vmem:[%s131 + $0x4b8] sm:$0xff]
        %v347 = vld [vmem:[%s131 + $0x4c0] sm:$0xff]
        %v348 = vld [vmem:[%s131 + $0x4c8] sm:$0xff]
        %v349 = vld [vmem:[%s131 + $0x4d0] sm:$0xff]
        %v350 = vld [vmem:[%s131 + $0x4d8] sm:$0xff]
        %v351 = vld [vmem:[%s131 + $0x4e0] sm:$0xff]
        %v352 = vld [vmem:[%s131 + $0x4e8] sm:$0xff]
        %v353 = vld [vmem:[%s131 + $0x4f0] sm:$0xff]
        %v354 = vld [vmem:[%s131 + $0x4f8] sm:$0xff]
        %v355 = vld [vmem:[%s131 + $0x500] sm:$0xff]
        %v356 = vld [vmem:[%s131 + $0x508] sm:$0xff]
        %v357 = vld [vmem:[%s131 + $0x510] sm:$0xff]
        %v358 = vld [vmem:[%s131 + $0x518] sm:$0xff]
        %v359 = vld [vmem:[%s131 + $0x520] sm:$0xff]
        %v360 = vld [vmem:[%s131 + $0x528] sm:$0xff]
        %v361 = vld [vmem:[%s131 + $0x530] sm:$0xff]
        %v362 = vld [vmem:[%s131 + $0x538] sm:$0xff]
        %v363 = vld [vmem:[%s131 + $0x540] sm:$0xff]
        %v364 = vld [vmem:[%s131 + $0x548] sm:$0xff]
        %v365 = vld [vmem:[%s131 + $0x550] sm:$0xff]
        %v366 = vld [vmem:[%s131 + $0x558] sm:$0xff]
        %v367 = vld [vmem:[%s131 + $0x560] sm:$0xff]
        %v368 = vld [vmem:[%s131 + $0x568] sm:$0xff]
        %v369 = vld [vmem:[%s131 + $0x570] sm:$0xff]
        %v370 = vld [vmem:[%s131 + $0x578] sm:$0xff]
        %v371 = vld [vmem:[%s131 + $0x580] sm:$0xff]
        %v372 = vld [vmem:[%s131 + $0x588] sm:$0xff]
        %v373 = vld [vmem:[%s131 + $0x590] sm:$0xff]
        %v374 = vld [vmem:[%s131 + $0x598] sm:$0xff]
        %v375 = vld [vmem:[%s131 + $0x5a0] sm:$0xff]
        %v376 = vld [vmem:[%s131 + $0x5a8] sm:$0xff]
        %v377 = vld [vmem:[%s131 + $0x5b0] sm:$0xff]
        %v378 = vld [vmem:[%s131 + $0x5b8] sm:$0xff]
        %v379 = vld [vmem:[%s131 + $0x5c0] sm:$0xff]
        %v380 = vld [vmem:[%s131 + $0x5c8] sm:$0xff]
        %v381 = vld [vmem:[%s131 + $0x5d0] sm:$0xff]
        %v382 = vld [vmem:[%s131 + $0x5d8] sm:$0xff]
        %v383 = vld [vmem:[%s131 + $0x5e0] sm:$0xff]
        %v384 = vld [vmem:[%s131 + $0x5e8] sm:$0xff]
        %v385 = vld [vmem:[%s131 + $0x5f0] sm:$0xff]
        %v386 = vld [vmem:[%s131 + $0x5f8] sm:$0xff]
        %v387 = vld [vmem:[%s131 + $0x600] sm:$0xff]
        %v388 = vld [vmem:[%s131 + $0x608] sm:$0xff]
        %v389 = vld [vmem:[%s131 + $0x610] sm:$0xff]
        %v390 = vld [vmem:[%s131 + $0x618] sm:$0xff]
        %v391 = vld [vmem:[%s131 + $0x620] sm:$0xff]
        %v392 = vld [vmem:[%s131 + $0x628] sm:$0xff]
        %v393 = vld [vmem:[%s131 + $0x630] sm:$0xff]
        %v394 = vld [vmem:[%s131 + $0x638] sm:$0xff]
        %v395 = vld [vmem:[%s131 + $0x640] sm:$0xff]
        %v396 = vld [vmem:[%s131 + $0x648] sm:$0xff]
        %v397 = vld [vmem:[%s131 + $0x650] sm:$0xff]
        %v398 = vld [vmem:[%s131 + $0x658] sm:$0xff]
        %v399 = vld [vmem:[%s131 + $0x660] sm:$0xff]
        %v400 = vld [vmem:[%s131 + $0x668] sm:$0xff]
        %v401 = vld [vmem:[%s131 + $0x670] sm:$0xff]
        %v402 = vld [vmem:[%s131 + $0x678] sm:$0xff]
        %v403 = vld [vmem:[%s131 + $0x680] sm:$0xff]
        %v404 = vld [vmem:[%s131 + $0x688] sm:$0xff]
        %v405 = vld [vmem:[%s131 + $0x690] sm:$0xff]
        %v406 = vld [vmem:[%s131 + $0x698] sm:$0xff]
        %v407 = vld [vmem:[%s131 + $0x6a0] sm:$0xff]
        %v408 = vld [vmem:[%s131 + $0x6a8] sm:$0xff]
        %v409 = vld [vmem:[%s131 + $0x6b0] sm:$0xff]
        %v410 = vld [vmem:[%s131 + $0x6b8] sm:$0xff]
        %v411 = vld [vmem:[%s131 + $0x6c0] sm:$0xff]
        %v412 = vld [vmem:[%s131 + $0x6c8] sm:$0xff]
        %v413 = vld [vmem:[%s131 + $0x6d0] sm:$0xff]
        %v414 = vld [vmem:[%s131 + $0x6d8] sm:$0xff]
        %v415 = vld [vmem:[%s131 + $0x6e0] sm:$0xff]
        %v416 = vld [vmem:[%s131 + $0x6e8] sm:$0xff]
        %v417 = vld [vmem:[%s131 + $0x6f0] sm:$0xff]
        %v418 = vld [vmem:[%s131 + $0x6f8] sm:$0xff]
        %v419 = vld [vmem:[%s131 + $0x700] sm:$0xff]
        %v420 = vld [vmem:[%s131 + $0x708] sm:$0xff]
        %v421 = vld [vmem:[%s131 + $0x710] sm:$0xff]
        %v422 = vld [vmem:[%s131 + $0x718] sm:$0xff]
        %v423 = vld [vmem:[%s131 + $0x720] sm:$0xff]
        %v424 = vld [vmem:[%s131 + $0x728] sm:$0xff]
        %v425 = vld [vmem:[%s131 + $0x730] sm:$0xff]
        %v426 = vld [vmem:[%s131 + $0x738] sm:$0xff]
        %v427 = vld [vmem:[%s131 + $0x740] sm:$0xff]
        %v428 = vld [vmem:[%s131 + $0x748] sm:$0xff]
        %v429 = vld [vmem:[%s131 + $0x750] sm:$0xff]
        %v430 = vld [vmem:[%s131 + $0x758] sm:$0xff]
        %v431 = vld [vmem:[%s131 + $0x760] sm:$0xff]
        %v432 = vld [vmem:[%s131 + $0x768] sm:$0xff]
        %v433 = vld [vmem:[%s131 + $0x770] sm:$0xff]
        %v434 = vld [vmem:[%s131 + $0x778] sm:$0xff]
        %v435 = vld [vmem:[%s131 + $0x780] sm:$0xff]
        %v436 = vld [vmem:[%s131 + $0x788] sm:$0xff]
        %v437 = vld [vmem:[%s131 + $0x790] sm:$0xff]
        %v438 = vld [vmem:[%s131 + $0x798] sm:$0xff]
        %v439 = vld [vmem:[%s131 + $0x7a0] sm:$0xff]
        %v440 = vld [vmem:[%s131 + $0x7a8] sm:$0xff]
        %v441 = vld [vmem:[%s131 + $0x7b0] sm:$0xff]
        %v442 = vld [vmem:[%s131 + $0x7b8] sm:$0xff]
        %v443 = vld [vmem:[%s131 + $0x7c0] sm:$0xff]
        %v444 = vld [vmem:[%s131 + $0x7c8] sm:$0xff]
        %v445 = vld [vmem:[%s131 + $0x7d0] sm:$0xff]
        %v446 = vld [vmem:[%s131 + $0x7d8] sm:$0xff]
        %v447 = vld [vmem:[%s131 + $0x7e0] sm:$0xff]
        %v448 = vld [vmem:[%s131 + $0x7e8] sm:$0xff]
        %v449 = vld [vmem:[%s131 + $0x7f0] sm:$0xff]
        %v450 = vld [vmem:[%s131 + $0x7f8] sm:$0xff]
        %v451 = vadd.f32 %v195, %v196
        %v452 = vadd.f32 %v203, %v204
        %v453 = vadd.f32 %v211, %v212
        %v454 = vadd.f32 %v219, %v220
        %v455 = vadd.f32 %v227, %v228
        %v456 = vadd.f32 %v235, %v236
        %v457 = vadd.f32 %v243, %v244
        %v458 = vadd.f32 %v251, %v252
        %v459 = vadd.f32 %v259, %v260
        %v460 = vadd.f32 %v267, %v268
        %v461 = vadd.f32 %v275, %v276
        %v462 = vadd.f32 %v283, %v284
        %v463 = vadd.f32 %v291, %v292
        %v464 = vadd.f32 %v299, %v300
        %v465 = vadd.f32 %v307, %v308
        %v466 = vadd.f32 %v315, %v316
        %v467 = vadd.f32 %v323, %v324
        %v468 = vadd.f32 %v331, %v332
        %v469 = vadd.f32 %v339, %v340
        %v470 = vadd.f32 %v347, %v348
        %v471 = vadd.f32 %v355, %v356
        %v472 = vadd.f32 %v363, %v364
        %v473 = vadd.f32 %v371, %v372
        %v474 = vadd.f32 %v379, %v380
        %v475 = vadd.f32 %v387, %v388
        %v476 = vadd.f32 %v395, %v396
        %v477 = vadd.f32 %v403, %v404
        %v478 = vadd.f32 %v411, %v412
        %v479 = vadd.f32 %v419, %v420
        %v480 = vadd.f32 %v427, %v428
        %v481 = vadd.f32 %v435, %v436
        %v482 = vadd.f32 %v443, %v444
        %v483 = vadd.f32 %v451, %v197
        %v484 = vadd.f32 %v452, %v205
        %v485 = vadd.f32 %v453, %v213
        %v486 = vadd.f32 %v454, %v221
        %v487 = vadd.f32 %v455, %v229
        %v488 = vadd.f32 %v456, %v237
        %v489 = vadd.f32 %v457, %v245
        %v490 = vadd.f32 %v458, %v253
        %v491 = vadd.f32 %v459, %v261
        %v492 = vadd.f32 %v460, %v269
        %v493 = vadd.f32 %v461, %v277
        %v494 = vadd.f32 %v462, %v285
        %v495 = vadd.f32 %v463, %v293
        %v496 = vadd.f32 %v464, %v301
        %v497 = vadd.f32 %v465, %v309
        %v498 = vadd.f32 %v466, %v317
        %v499 = vadd.f32 %v467, %v325
        %v500 = vadd.f32 %v468, %v333
        %v501 = vadd.f32 %v469, %v341
        %v502 = vadd.f32 %v470, %v349
        %v503 = vadd.f32 %v471, %v357
        %v504 = vadd.f32 %v472, %v365
        %v505 = vadd.f32 %v473, %v373
        %v506 = vadd.f32 %v474, %v381
        %v507 = vadd.f32 %v475, %v389
        %v508 = vadd.f32 %v476, %v397
        %v509 = vadd.f32 %v477, %v405
        %v510 = vadd.f32 %v478, %v413
        %v511 = vadd.f32 %v479, %v421
        %v512 = vadd.f32 %v480, %v429
        %v513 = vadd.f32 %v481, %v437
        %v514 = vadd.f32 %v482, %v445
        %v515 = vadd.f32 %v483, %v198
        %v516 = vadd.f32 %v484, %v206
        %v517 = vadd.f32 %v485, %v214
        %v518 = vadd.f32 %v486, %v222
        %v519 = vadd.f32 %v487, %v230
        %v520 = vadd.f32 %v488, %v238
        %v521 = vadd.f32 %v489, %v246
        %v522 = vadd.f32 %v490, %v254
        %v523 = vadd.f32 %v491, %v262
        %v524 = vadd.f32 %v492, %v270
        %v525 = vadd.f32 %v493, %v278
        %v526 = vadd.f32 %v494, %v286
        %v527 = vadd.f32 %v495, %v294
        %v528 = vadd.f32 %v496, %v302
        %v529 = vadd.f32 %v497, %v310
        %v530 = vadd.f32 %v498, %v318
        %v531 = vadd.f32 %v499, %v326
        %v532 = vadd.f32 %v500, %v334
        %v533 = vadd.f32 %v501, %v342
        %v534 = vadd.f32 %v502, %v350
        %v535 = vadd.f32 %v503, %v358
        %v536 = vadd.f32 %v504, %v366
        %v537 = vadd.f32 %v505, %v374
        %v538 = vadd.f32 %v506, %v382
        %v539 = vadd.f32 %v507, %v390
        %v540 = vadd.f32 %v508, %v398
        %v541 = vadd.f32 %v509, %v406
        %v542 = vadd.f32 %v510, %v414
        %v543 = vadd.f32 %v511, %v422
        %v544 = vadd.f32 %v512, %v430
        %v545 = vadd.f32 %v513, %v438
        %v546 = vadd.f32 %v514, %v446
        %v547 = vadd.f32 %v515, %v199
        %v548 = vadd.f32 %v516, %v207
        %v549 = vadd.f32 %v517, %v215
        %v550 = vadd.f32 %v518, %v223
        %v551 = vadd.f32 %v519, %v231
        %v552 = vadd.f32 %v520, %v239
        %v553 = vadd.f32 %v521, %v247
        %v554 = vadd.f32 %v522, %v255
        %v555 = vadd.f32 %v523, %v263
        %v556 = vadd.f32 %v524, %v271
        %v557 = vadd.f32 %v525, %v279
        %v558 = vadd.f32 %v526, %v287
        %v559 = vadd.f32 %v527, %v295
        %v560 = vadd.f32 %v528, %v303
        %v561 = vadd.f32 %v529, %v311
        %v562 = vadd.f32 %v530, %v319
        %v563 = vadd.f32 %v531, %v327
        %v564 = vadd.f32 %v532, %v335
        %v565 = vadd.f32 %v533, %v343
        %v566 = vadd.f32 %v534, %v351
        %v567 = vadd.f32 %v535, %v359
        %v568 = vadd.f32 %v536, %v367
        %v569 = vadd.f32 %v537, %v375
        %v570 = vadd.f32 %v538, %v383
        %v571 = vadd.f32 %v539, %v391
        %v572 = vadd.f32 %v540, %v399
        %v573 = vadd.f32 %v541, %v407
        %v574 = vadd.f32 %v542, %v415
        %v575 = vadd.f32 %v543, %v423
        %v576 = vadd.f32 %v544, %v431
        %v577 = vadd.f32 %v545, %v439
        %v578 = vadd.f32 %v546, %v447
        %v579 = vadd.f32 %v547, %v200
        %v580 = vadd.f32 %v548, %v208
        %v581 = vadd.f32 %v549, %v216
        %v582 = vadd.f32 %v550, %v224
        %v583 = vadd.f32 %v551, %v232
        %v584 = vadd.f32 %v552, %v240
        %v585 = vadd.f32 %v553, %v248
        %v586 = vadd.f32 %v554, %v256
        %v587 = vadd.f32 %v555, %v264
        %v588 = vadd.f32 %v556, %v272
        %v589 = vadd.f32 %v557, %v280
        %v590 = vadd.f32 %v558, %v288
        %v591 = vadd.f32 %v559, %v296
        %v592 = vadd.f32 %v560, %v304
        %v593 = vadd.f32 %v561, %v312
        %v594 = vadd.f32 %v562, %v320
        %v595 = vadd.f32 %v563, %v328
        %v596 = vadd.f32 %v564, %v336
        %v597 = vadd.f32 %v565, %v344
        %v598 = vadd.f32 %v566, %v352
        %v599 = vadd.f32 %v567, %v360
        %v600 = vadd.f32 %v568, %v368
        %v601 = vadd.f32 %v569, %v376
        %v602 = vadd.f32 %v570, %v384
        %v603 = vadd.f32 %v571, %v392
        %v604 = vadd.f32 %v572, %v400
        %v605 = vadd.f32 %v573, %v408
        %v606 = vadd.f32 %v574, %v416
        %v607 = vadd.f32 %v575, %v424
        %v608 = vadd.f32 %v576, %v432
        %v609 = vadd.f32 %v577, %v440
        %v610 = vadd.f32 %v578, %v448
        %v611 = vadd.f32 %v579, %v201
        %v612 = vadd.f32 %v580, %v209
        %v613 = vadd.f32 %v581, %v217
        %v614 = vadd.f32 %v582, %v225
        %v615 = vadd.f32 %v583, %v233
        %v616 = vadd.f32 %v584, %v241
        %v617 = vadd.f32 %v585, %v249
        %v618 = vadd.f32 %v586, %v257
        %v619 = vadd.f32 %v587, %v265
        %v620 = vadd.f32 %v588, %v273
        %v621 = vadd.f32 %v589, %v281
        %v622 = vadd.f32 %v590, %v289
        %v623 = vadd.f32 %v591, %v297
        %v624 = vadd.f32 %v592, %v305
        %v625 = vadd.f32 %v593, %v313
        %v626 = vadd.f32 %v594, %v321
        %v627 = vadd.f32 %v595, %v329
        %v628 = vadd.f32 %v596, %v337
        %v629 = vadd.f32 %v597, %v345
        %v630 = vadd.f32 %v598, %v353
        %v631 = vadd.f32 %v599, %v361
        %v632 = vadd.f32 %v600, %v369
        %v633 = vadd.f32 %v601, %v377
        %v634 = vadd.f32 %v602, %v385
        %v635 = vadd.f32 %v603, %v393
        %v636 = vadd.f32 %v604, %v401
        %v637 = vadd.f32 %v605, %v409
        %v638 = vadd.f32 %v606, %v417
        %v639 = vadd.f32 %v607, %v425
        %v640 = vadd.f32 %v608, %v433
        %v641 = vadd.f32 %v609, %v441
        %v642 = vadd.f32 %v610, %v449
        %v643 = vadd.f32 %v611, %v202
        %v644 = vadd.f32 %v612, %v210
        %v645 = vadd.f32 %v613, %v218
        %v646 = vadd.f32 %v614, %v226
        %v647 = vadd.f32 %v615, %v234
        %v648 = vadd.f32 %v616, %v242
        %v649 = vadd.f32 %v617, %v250
        %v650 = vadd.f32 %v618, %v258
        %v651 = vadd.f32 %v619, %v266
        %v652 = vadd.f32 %v620, %v274
        %v653 = vadd.f32 %v621, %v282
        %v654 = vadd.f32 %v622, %v290
        %v655 = vadd.f32 %v623, %v298
        %v656 = vadd.f32 %v624, %v306
        %v657 = vadd.f32 %v625, %v314
        %v658 = vadd.f32 %v626, %v322
        %v659 = vadd.f32 %v627, %v330
        %v660 = vadd.f32 %v628, %v338
        %v661 = vadd.f32 %v629, %v346
        %v662 = vadd.f32 %v630, %v354
        %v663 = vadd.f32 %v631, %v362
        %v664 = vadd.f32 %v632, %v370
        %v665 = vadd.f32 %v633, %v378
        %v666 = vadd.f32 %v634, %v386
        %v667 = vadd.f32 %v635, %v394
        %v668 = vadd.f32 %v636, %v402
        %v669 = vadd.f32 %v637, %v410
        %v670 = vadd.f32 %v638, %v418
        %v671 = vadd.f32 %v639, %v426
        %v672 = vadd.f32 %v640, %v434
        %v673 = vadd.f32 %v641, %v442
        %v674 = vadd.f32 %v642, %v450
        %v675 = vld [vmem:[#allocation2] sm:$0xff]
        %v676 = vld [vmem:[#allocation2 + $0x8] sm:$0xff]
        %v677 = vld [vmem:[#allocation2 + $0x10] sm:$0xff]
        %v678 = vld [vmem:[#allocation2 + $0x18] sm:$0xff]
        %v679 = vld [vmem:[#allocation2 + $0x20] sm:$0xff]
        %v680 = vld [vmem:[#allocation2 + $0x28] sm:$0xff]
        %v681 = vld [vmem:[#allocation2 + $0x30] sm:$0xff]
        %v682 = vld [vmem:[#allocation2 + $0x38] sm:$0xff]
        %v683 = vld [vmem:[#allocation2 + $0x40] sm:$0xff]
        %v684 = vld [vmem:[#allocation2 + $0x48] sm:$0xff]
        %v685 = vld [vmem:[#allocation2 + $0x50] sm:$0xff]
        %v686 = vld [vmem:[#allocation2 + $0x58] sm:$0xff]
        %v687 = vld [vmem:[#allocation2 + $0x60] sm:$0xff]
        %v688 = vld [vmem:[#allocation2 + $0x68] sm:$0xff]
        %v689 = vld [vmem:[#allocation2 + $0x70] sm:$0xff]
        %v690 = vld [vmem:[#allocation2 + $0x78] sm:$0xff]
        %v691 = vld [vmem:[#allocation2 + $0x80] sm:$0xff]
        %v692 = vld [vmem:[#allocation2 + $0x88] sm:$0xff]
        %v693 = vld [vmem:[#allocation2 + $0x90] sm:$0xff]
        %v694 = vld [vmem:[#allocation2 + $0x98] sm:$0xff]
        %v695 = vld [vmem:[#allocation2 + $0xa0] sm:$0xff]
        %v696 = vld [vmem:[#allocation2 + $0xa8] sm:$0xff]
        %v697 = vld [vmem:[#allocation2 + $0xb0] sm:$0xff]
        %v698 = vld [vmem:[#allocation2 + $0xb8] sm:$0xff]
        %v699 = vld [vmem:[#allocation2 + $0xc0] sm:$0xff]
        %v700 = vld [vmem:[#allocation2 + $0xc8] sm:$0xff]
        %v701 = vld [vmem:[#allocation2 + $0xd0] sm:$0xff]
        %v702 = vld [vmem:[#allocation2 + $0xd8] sm:$0xff]
        %v703 = vld [vmem:[#allocation2 + $0xe0] sm:$0xff]
        %v704 = vld [vmem:[#allocation2 + $0xe8] sm:$0xff]
        %v705 = vld [vmem:[#allocation2 + $0xf0] sm:$0xff]
        %v706 = vld [vmem:[#allocation2 + $0xf8] sm:$0xff]
        %v707 = vadd.f32 %v675, %v643
        %v708 = vadd.f32 %v676, %v644
        %v709 = vadd.f32 %v677, %v645
        %v710 = vadd.f32 %v678, %v646
        %v711 = vadd.f32 %v679, %v647
        %v712 = vadd.f32 %v680, %v648
        %v713 = vadd.f32 %v681, %v649
        %v714 = vadd.f32 %v682, %v650
        %v715 = vadd.f32 %v683, %v651
        %v716 = vadd.f32 %v684, %v652
        %v717 = vadd.f32 %v685, %v653
        %v718 = vadd.f32 %v686, %v654
        %v719 = vadd.f32 %v687, %v655
        %v720 = vadd.f32 %v688, %v656
        %v721 = vadd.f32 %v689, %v657
        %v722 = vadd.f32 %v690, %v658
        %v723 = vadd.f32 %v691, %v659
        %v724 = vadd.f32 %v692, %v660
        %v725 = vadd.f32 %v693, %v661
        %v726 = vadd.f32 %v694, %v662
        %v727 = vadd.f32 %v695, %v663
        %v728 = vadd.f32 %v696, %v664
        %v729 = vadd.f32 %v697, %v665
        %v730 = vadd.f32 %v698, %v666
        %v731 = vadd.f32 %v699, %v667
        %v732 = vadd.f32 %v700, %v668
        %v733 = vadd.f32 %v701, %v669
        %v734 = vadd.f32 %v702, %v670
        %v735 = vadd.f32 %v703, %v671
        %v736 = vadd.f32 %v704, %v672
        %v737 = vadd.f32 %v705, %v673
        %v738 = vadd.f32 %v706, %v674
        %739 = vst [vmem:[#allocation2] sm:$0xff] %v707
        %740 = vst [vmem:[#allocation2 + $0x8] sm:$0xff] %v708
        %741 = vst [vmem:[#allocation2 + $0x10] sm:$0xff] %v709
        %742 = vst [vmem:[#allocation2 + $0x18] sm:$0xff] %v710
        %743 = vst [vmem:[#allocation2 + $0x20] sm:$0xff] %v711
        %744 = vst [vmem:[#allocation2 + $0x28] sm:$0xff] %v712
        %745 = vst [vmem:[#allocation2 + $0x30] sm:$0xff] %v713
        %746 = vst [vmem:[#allocation2 + $0x38] sm:$0xff] %v714
        %747 = vst [vmem:[#allocation2 + $0x40] sm:$0xff] %v715
        %748 = vst [vmem:[#allocation2 + $0x48] sm:$0xff] %v716
        %749 = vst [vmem:[#allocation2 + $0x50] sm:$0xff] %v717
        %750 = vst [vmem:[#allocation2 + $0x58] sm:$0xff] %v718
        %751 = vst [vmem:[#allocation2 + $0x60] sm:$0xff] %v719
        %752 = vst [vmem:[#allocation2 + $0x68] sm:$0xff] %v720
        %753 = vst [vmem:[#allocation2 + $0x70] sm:$0xff] %v721
        %754 = vst [vmem:[#allocation2 + $0x78] sm:$0xff] %v722
        %755 = vst [vmem:[#allocation2 + $0x80] sm:$0xff] %v723
        %756 = vst [vmem:[#allocation2 + $0x88] sm:$0xff] %v724
        %757 = vst [vmem:[#allocation2 + $0x90] sm:$0xff] %v725
        %758 = vst [vmem:[#allocation2 + $0x98] sm:$0xff] %v726
        %759 = vst [vmem:[#allocation2 + $0xa0] sm:$0xff] %v727
        %760 = vst [vmem:[#allocation2 + $0xa8] sm:$0xff] %v728
        %761 = vst [vmem:[#allocation2 + $0xb0] sm:$0xff] %v729
        %762 = vst [vmem:[#allocation2 + $0xb8] sm:$0xff] %v730
        %763 = vst [vmem:[#allocation2 + $0xc0] sm:$0xff] %v731
        %764 = vst [vmem:[#allocation2 + $0xc8] sm:$0xff] %v732
        %765 = vst [vmem:[#allocation2 + $0xd0] sm:$0xff] %v733
        %766 = vst [vmem:[#allocation2 + $0xd8] sm:$0xff] %v734
        %767 = vst [vmem:[#allocation2 + $0xe0] sm:$0xff] %v735
        %768 = vst [vmem:[#allocation2 + $0xe8] sm:$0xff] %v736
        %769 = vst [vmem:[#allocation2 + $0xf0] sm:$0xff] %v737
        %770 = vst [vmem:[#allocation2 + $0xf8] sm:$0xff] %v738
        // Predicated region
        $region33: #{tpu_custom_call.1} parent=23 // pred_check
          %p771 = pneg %p159
        $region34: #{tpu_custom_call.1} parent=23 // pred_check_branch
          %773 = sbr.rel (%p771) target = $region36
        $region35: #{tpu_custom_call.1} parent=23 // pred_region
          %v774 = vld [vmem:[#allocation2] sm:$0xff]
          %v775 = vld [vmem:[#allocation2 + $0x8] sm:$0xff]
          %v776 = vld [vmem:[#allocation2 + $0x10] sm:$0xff]
          %v777 = vld [vmem:[#allocation2 + $0x18] sm:$0xff]
          %v778 = vld [vmem:[#allocation2 + $0x20] sm:$0xff]
          %v779 = vld [vmem:[#allocation2 + $0x28] sm:$0xff]
          %v780 = vld [vmem:[#allocation2 + $0x30] sm:$0xff]
          %v781 = vld [vmem:[#allocation2 + $0x38] sm:$0xff]
          %v782 = vld [vmem:[#allocation2 + $0x40] sm:$0xff]
          %v783 = vld [vmem:[#allocation2 + $0x48] sm:$0xff]
          %v784 = vld [vmem:[#allocation2 + $0x50] sm:$0xff]
          %v785 = vld [vmem:[#allocation2 + $0x58] sm:$0xff]
          %v786 = vld [vmem:[#allocation2 + $0x60] sm:$0xff]
          %v787 = vld [vmem:[#allocation2 + $0x68] sm:$0xff]
          %v788 = vld [vmem:[#allocation2 + $0x70] sm:$0xff]
          %v789 = vld [vmem:[#allocation2 + $0x78] sm:$0xff]
          %v790 = vld [vmem:[#allocation2 + $0x80] sm:$0xff]
          %v791 = vld [vmem:[#allocation2 + $0x88] sm:$0xff]
          %v792 = vld [vmem:[#allocation2 + $0x90] sm:$0xff]
          %v793 = vld [vmem:[#allocation2 + $0x98] sm:$0xff]
          %v794 = vld [vmem:[#allocation2 + $0xa0] sm:$0xff]
          %v795 = vld [vmem:[#allocation2 + $0xa8] sm:$0xff]
          %v796 = vld [vmem:[#allocation2 + $0xb0] sm:$0xff]
          %v797 = vld [vmem:[#allocation2 + $0xb8] sm:$0xff]
          %v798 = vld [vmem:[#allocation2 + $0xc0] sm:$0xff]
          %v799 = vld [vmem:[#allocation2 + $0xc8] sm:$0xff]
          %v800 = vld [vmem:[#allocation2 + $0xd0] sm:$0xff]
          %v801 = vld [vmem:[#allocation2 + $0xd8] sm:$0xff]
          %v802 = vld [vmem:[#allocation2 + $0xe0] sm:$0xff]
          %v803 = vld [vmem:[#allocation2 + $0xe8] sm:$0xff]
          %v804 = vld [vmem:[#allocation2 + $0xf0] sm:$0xff]
          %v805 = vld [vmem:[#allocation2 + $0xf8] sm:$0xff]
          %806 = vadd.xlane.f32.xlu0 %v774
          %v807 = vpop.xlane.xlu0 %806
          %808 = vadd.xlane.f32.xlu0 %v775
          %v809 = vpop.xlane.xlu0 %808
          %810 = vadd.xlane.f32.xlu0 %v776
          %v811 = vpop.xlane.xlu0 %810
          %812 = vadd.xlane.f32.xlu0 %v777
          %v813 = vpop.xlane.xlu0 %812
          %814 = vadd.xlane.f32.xlu0 %v778
          %v815 = vpop.xlane.xlu0 %814
          %816 = vadd.xlane.f32.xlu0 %v779
          %v817 = vpop.xlane.xlu0 %816
          %818 = vadd.xlane.f32.xlu0 %v780
          %v819 = vpop.xlane.xlu0 %818
          %820 = vadd.xlane.f32.xlu0 %v781
          %v821 = vpop.xlane.xlu0 %820
          %822 = vadd.xlane.f32.xlu0 %v782
          %v823 = vpop.xlane.xlu0 %822
          %824 = vadd.xlane.f32.xlu0 %v783
          %v825 = vpop.xlane.xlu0 %824
          %826 = vadd.xlane.f32.xlu0 %v784
          %v827 = vpop.xlane.xlu0 %826
          %828 = vadd.xlane.f32.xlu0 %v785
          %v829 = vpop.xlane.xlu0 %828
          %830 = vadd.xlane.f32.xlu0 %v786
          %v831 = vpop.xlane.xlu0 %830
          %832 = vadd.xlane.f32.xlu0 %v787
          %v833 = vpop.xlane.xlu0 %832
          %834 = vadd.xlane.f32.xlu0 %v788
          %v835 = vpop.xlane.xlu0 %834
          %836 = vadd.xlane.f32.xlu0 %v789
          %v837 = vpop.xlane.xlu0 %836
          %838 = vadd.xlane.f32.xlu0 %v790
          %v839 = vpop.xlane.xlu0 %838
          %840 = vadd.xlane.f32.xlu0 %v791
          %v841 = vpop.xlane.xlu0 %840
          %842 = vadd.xlane.f32.xlu0 %v792
          %v843 = vpop.xlane.xlu0 %842
          %844 = vadd.xlane.f32.xlu0 %v793
          %v845 = vpop.xlane.xlu0 %844
          %846 = vadd.xlane.f32.xlu0 %v794
          %v847 = vpop.xlane.xlu0 %846
          %848 = vadd.xlane.f32.xlu0 %v795
          %v849 = vpop.xlane.xlu0 %848
          %850 = vadd.xlane.f32.xlu0 %v796
          %v851 = vpop.xlane.xlu0 %850
          %852 = vadd.xlane.f32.xlu0 %v797
          %v853 = vpop.xlane.xlu0 %852
          %854 = vadd.xlane.f32.xlu0 %v798
          %v855 = vpop.xlane.xlu0 %854
          %856 = vadd.xlane.f32.xlu0 %v799
          %v857 = vpop.xlane.xlu0 %856
          %858 = vadd.xlane.f32.xlu0 %v800
          %v859 = vpop.xlane.xlu0 %858
          %860 = vadd.xlane.f32.xlu0 %v801
          %v861 = vpop.xlane.xlu0 %860
          %862 = vadd.xlane.f32.xlu0 %v802
          %v863 = vpop.xlane.xlu0 %862
          %864 = vadd.xlane.f32.xlu0 %v803
          %v865 = vpop.xlane.xlu0 %864
          %866 = vadd.xlane.f32.xlu0 %v804
          %v867 = vpop.xlane.xlu0 %866
          %868 = vadd.xlane.f32.xlu0 %v805
          %v869 = vpop.xlane.xlu0 %868
          %v870 = vmul.f32 %v807, 0.0009765625
          %v871 = vmul.f32 %v809, 0.0009765625
          %v872 = vmul.f32 %v811, 0.0009765625
          %v873 = vmul.f32 %v813, 0.0009765625
          %v874 = vmul.f32 %v815, 0.0009765625
          %v875 = vmul.f32 %v817, 0.0009765625
          %v876 = vmul.f32 %v819, 0.0009765625
          %v877 = vmul.f32 %v821, 0.0009765625
          %v878 = vmul.f32 %v823, 0.0009765625
          %v879 = vmul.f32 %v825, 0.0009765625
          %v880 = vmul.f32 %v827, 0.0009765625
          %v881 = vmul.f32 %v829, 0.0009765625
          %v882 = vmul.f32 %v831, 0.0009765625
          %v883 = vmul.f32 %v833, 0.0009765625
          %v884 = vmul.f32 %v835, 0.0009765625
          %v885 = vmul.f32 %v837, 0.0009765625
          %v886 = vmul.f32 %v839, 0.0009765625
          %v887 = vmul.f32 %v841, 0.0009765625
          %v888 = vmul.f32 %v843, 0.0009765625
          %v889 = vmul.f32 %v845, 0.0009765625
          %v890 = vmul.f32 %v847, 0.0009765625
          %v891 = vmul.f32 %v849, 0.0009765625
          %v892 = vmul.f32 %v851, 0.0009765625
          %v893 = vmul.f32 %v853, 0.0009765625
          %v894 = vmul.f32 %v855, 0.0009765625
          %v895 = vmul.f32 %v857, 0.0009765625
          %v896 = vmul.f32 %v859, 0.0009765625
          %v897 = vmul.f32 %v861, 0.0009765625
          %v898 = vmul.f32 %v863, 0.0009765625
          %v899 = vmul.f32 %v865, 0.0009765625
          %v900 = vmul.f32 %v867, 0.0009765625
          %v901 = vmul.f32 %v869, 0.0009765625
          %vm902 = vcmask 7168
          %903 = vst.msk [vmem:[%s157] sm:$0xff] %vm902, %v870
          %904 = vst.msk [vmem:[%s157 + $0x8] sm:$0xff] %vm902, %v871
          %905 = vst.msk [vmem:[%s157 + $0x10] sm:$0xff] %vm902, %v872
          %906 = vst.msk [vmem:[%s157 + $0x18] sm:$0xff] %vm902, %v873
          %907 = vst.msk [vmem:[%s157 + $0x20] sm:$0xff] %vm902, %v874
          %908 = vst.msk [vmem:[%s157 + $0x28] sm:$0xff] %vm902, %v875
          %909 = vst.msk [vmem:[%s157 + $0x30] sm:$0xff] %vm902, %v876
          %910 = vst.msk [vmem:[%s157 + $0x38] sm:$0xff] %vm902, %v877
          %911 = vst.msk [vmem:[%s157 + $0x40] sm:$0xff] %vm902, %v878
          %912 = vst.msk [vmem:[%s157 + $0x48] sm:$0xff] %vm902, %v879
          %913 = vst.msk [vmem:[%s157 + $0x50] sm:$0xff] %vm902, %v880
          %914 = vst.msk [vmem:[%s157 + $0x58] sm:$0xff] %vm902, %v881
          %915 = vst.msk [vmem:[%s157 + $0x60] sm:$0xff] %vm902, %v882
          %916 = vst.msk [vmem:[%s157 + $0x68] sm:$0xff] %vm902, %v883
          %917 = vst.msk [vmem:[%s157 + $0x70] sm:$0xff] %vm902, %v884
          %918 = vst.msk [vmem:[%s157 + $0x78] sm:$0xff] %vm902, %v885
          %919 = vst.msk [vmem:[%s157 + $0x80] sm:$0xff] %vm902, %v886
          %920 = vst.msk [vmem:[%s157 + $0x88] sm:$0xff] %vm902, %v887
          %921 = vst.msk [vmem:[%s157 + $0x90] sm:$0xff] %vm902, %v888
          %922 = vst.msk [vmem:[%s157 + $0x98] sm:$0xff] %vm902, %v889
          %923 = vst.msk [vmem:[%s157 + $0xa0] sm:$0xff] %vm902, %v890
          %924 = vst.msk [vmem:[%s157 + $0xa8] sm:$0xff] %vm902, %v891
          %925 = vst.msk [vmem:[%s157 + $0xb0] sm:$0xff] %vm902, %v892
          %926 = vst.msk [vmem:[%s157 + $0xb8] sm:$0xff] %vm902, %v893
          %927 = vst.msk [vmem:[%s157 + $0xc0] sm:$0xff] %vm902, %v894
          %928 = vst.msk [vmem:[%s157 + $0xc8] sm:$0xff] %vm902, %v895
          %929 = vst.msk [vmem:[%s157 + $0xd0] sm:$0xff] %vm902, %v896
          %930 = vst.msk [vmem:[%s157 + $0xd8] sm:$0xff] %vm902, %v897
          %931 = vst.msk [vmem:[%s157 + $0xe0] sm:$0xff] %vm902, %v898
          %932 = vst.msk [vmem:[%s157 + $0xe8] sm:$0xff] %vm902, %v899
          %933 = vst.msk [vmem:[%s157 + $0xf0] sm:$0xff] %vm902, %v900
          %934 = vst.msk [vmem:[%s157 + $0xf8] sm:$0xff] %vm902, %v901
        $region36: #{tpu_custom_call.1} parent=23 // pred_fallthru
          _
        %s935 = smul.u32 32, %s19
        %p936 = scmp.lt.s32.totalorder %s935, 63
        %s937 = scalar_select %p936, %s935, 63
        %s938 = smul.addr %s937, 8
        %s939 = scalar_lea.vmem %s1, %s938
        // Predicated region
        $region37: #{tpu_custom_call.1} parent=23 // pred_check
          %p940 = pneg %p73
        $region38: #{tpu_custom_call.1} parent=23 // pred_check_branch
          %942 = sbr.rel (%p940) target = $region40
        $region39: #{tpu_custom_call.1} parent=23 // pred_region
          %s943 = smul.u32 32, %s19
        $region40: #{tpu_custom_call.1} parent=23 // pred_fallthru
          _
      $region24: #{tpu_custom_call.1} parent=5 // pred_fallthru
        _
      %p944 = scmp.le.s32.totalorder 2, %s10
      // Predicated region
      $region41: #{tpu_custom_call.1} parent=5 // pred_check
        %p945 = pneg %p944
      $region42: #{tpu_custom_call.1} parent=5 // pred_check_branch
        %947 = sbr.rel (%p945) target = $region44
      $region43: #{tpu_custom_call.1} parent=5 // pred_region
        %s948 = ssub.s32 %s10, 2
        // Predicated region
        $region45: #{tpu_custom_call.1} parent=43 // pred_check
          %p949 = pneg %p79
        $region46: #{tpu_custom_call.1} parent=43 // pred_check_branch
          %951 = sbr.rel (%p949) target = $region48
        $region47: #{tpu_custom_call.1} parent=43 // pred_region
          %s952 = smul.u32 32, %s21
          %p953 = scmp.lt.s32.totalorder %s952, 63
          %s954 = scalar_select %p953, %s952, 63
          %s955 = smul.addr %s954, 8
          %s956 = scalar_lea.vmem %s1, %s955
        $region48: #{tpu_custom_call.1} parent=43 // pred_fallthru
          _
      $region44: #{tpu_custom_call.1} parent=5 // pred_fallthru
        _
    $region6: #{tpu_custom_call.1} parent=1 // loop_footer
      %s14 = sadd.s32 1, %s10
    $region7: #{tpu_custom_call.1} parent=1 // loop_footer_branch
      %9 = sbr.rel target = $region3
    $region8: #{tpu_custom_call.1} parent=1 // loop_exit
      _
    %957 = vsyncpa [#allocation4], 1
    %s958 = scalar_lea.sflag [#allocation4], 1
    %959 = vsyncpa %s958, 1

</llo_original>
